<compile_context>
chip_gen: v7x
topology: tpu7x:2x2x1
jax: 0.10.0
libtpu: 0.0.40
codegen_flags: <defaults>
</compile_context>

<pallas_src>
import jax
import jax.numpy as jnp
from jax.experimental import pallas as pl
from jax.experimental.pallas import tpu as pltpu


def joint_attention_kernel(rgb_ref, depth_ref,
                           aw1_ref, ab1_ref, aw2_ref, ab2_ref,
                           mw1_ref, mw2_ref,
                           sw1_ref, sw2_ref,
                           rgb_out_ref, depth_out_ref):
    x = rgb_ref[...]      # (Bt, C, HW)  -- C on sublane, HW on lane
    d = depth_ref[...]    # (Bt, C, HW)

    xf = x.astype(jnp.float32)
    df = d.astype(jnp.float32)

    # AdaptiveAvgPool2d(1) / AdaptiveMaxPool2d(1): reductions over the spatial
    # (lane) axis; keepdims keeps the channel axis on sublanes throughout.
    avg = jnp.mean(xf, axis=-1, keepdims=True)   # (Bt, C, 1)
    mx = jnp.max(df, axis=-1, keepdims=True)     # (Bt, C, 1)

    def layer1(v, w, b=None):
        # v: (Bt, C, 1), w: (C, Cr) [in, hidden]  ->  (Bt, 1, Cr)
        # VPU broadcast-multiply + sublane reduce (no MXU push for a 32x2 matvec).
        h = jnp.sum(v * w[None, :, :], axis=1, keepdims=True)
        if b is not None:                      # b: (1, Cr)
            h = h + b[None, :, :]
        return jnp.maximum(h, 0.0)             # ReLU

    def layer2(h, w, b=None):
        # h: (Bt, 1, Cr), w: (C, Cr) [out, hidden] -> (Bt, C, 1)
        o = jnp.sum(h * w[None, :, :], axis=2, keepdims=True)
        if b is not None:                      # b: (C, 1)
            o = o + b[None, :, :]
        return jax.nn.sigmoid(o)

    # avg branch: conv1x1(+bias) -> ReLU -> conv1x1(+bias) -> Sigmoid
    rgb_fea = layer2(layer1(avg, aw1_ref[...], ab1_ref[...]),
                     aw2_ref[...], ab2_ref[...])            # (Bt, C, 1)
    # max branch: conv1x1 -> ReLU -> conv1x1 -> Sigmoid (no biases)
    depth_fea = layer2(layer1(mx, mw1_ref[...]), mw2_ref[...])
    # sum branch
    sum_fea = layer2(layer1(rgb_fea + depth_fea, sw1_ref[...]), sw2_ref[...])

    # Residual folded into the gate:  x*s + x == x*(s+1).  Broadcast over HW.
    gate = (sum_fea + 1.0).astype(x.dtype)      # (Bt, C, 1)
    rgb_out_ref[...] = x * gate
    depth_out_ref[...] = d * gate


def _choose_batch_tile(B, per_elem_bytes, target_bytes):
    """Largest divisor of B whose I/O block fits `target_bytes`, while keeping
    >= 2 grid steps when B > 1 (so both v7x TensorCores get parallel work)."""
    best = 1
    for d in range(1, B + 1):
        if B % d:
            continue
        if d * per_elem_bytes <= target_bytes and (d < B or B == 1):
            best = d
    return best


def joint_attention(rgb_nchw, depth_nchw, params, *, target_block_bytes=2 << 20):
    B, C, H, W = rgb_nchw.shape
    assert depth_nchw.shape == rgb_nchw.shape
    HW = H * W

    # NCHW -> (B, C, H*W): contiguous reshape, no transpose, no extra HBM pass.
    rgb = rgb_nchw.reshape(B, C, HW)
    depth = depth_nchw.reshape(B, C, HW)

    aw1, ab1, aw2, ab2, mw1, mw2, sw1, sw2 = params

    itemsize = jnp.dtype(rgb.dtype).itemsize
    per_elem_bytes = C * HW * itemsize
    Bt = _choose_batch_tile(B, per_elem_bytes, target_block_bytes)
    grid = (B // Bt,)
    block_bytes = Bt * per_elem_bytes

    io_spec = pl.BlockSpec((Bt, C, HW), lambda b: (b, 0, 0))

    def full_spec(arr):
        nd = arr.ndim
        return pl.BlockSpec(arr.shape, lambda b, _n=nd: (0,) * _n)

    # 2 inputs + 2 outputs, double-buffered, plus weights & headroom.
    # TODO(synk): for very large feature maps (per-batch-element block of more
    # than a few MiB) split into a pooling/gate pass + an HW-tiled streaming
    # reweight pass so the design also fits v7x's 64 MiB VMEM.
    vmem_limit = int(min(max(8 * block_bytes + (4 << 20), 32 << 20), 64 << 20))

    cost = pl.CostEstimate(
        flops=int(4 * B * C * HW),                     # reweight + pooling (dominant)
        transcendentals=int(3 * B * C),                # the three sigmoid gates
        bytes_accessed=int(2 * 2 * B * C * HW * itemsize),  # read+write of both maps
    )

    out_shape = (jax.ShapeDtypeStruct((B, C, HW), rgb.dtype),
                 jax.ShapeDtypeStruct((B, C, HW), depth.dtype))

    rgb_o, depth_o = pl.pallas_call(
        joint_attention_kernel,
        out_shape=out_shape,
        grid_spec=pltpu.PrefetchScalarGridSpec(
            num_scalar_prefetch=0,
            grid=grid,
            in_specs=[io_spec, io_spec,
                      full_spec(aw1), full_spec(ab1), full_spec(aw2), full_spec(ab2),
                      full_spec(mw1), full_spec(mw2),
                      full_spec(sw1), full_spec(sw2)],
            out_specs=[io_spec, io_spec],
        ),
        compiler_params=pltpu.CompilerParams(
            dimension_semantics=("parallel",),
            vmem_limit_bytes=vmem_limit,
        ),
        cost_estimate=cost,
    )(rgb, depth, aw1, ab1, aw2, ab2, mw1, mw2, sw1, sw2)

    # (B, C, HW) -> NCHW: free reshape.
    return rgb_o.reshape(B, C, H, W), depth_o.reshape(B, C, H, W)


def init_params(key, C, ratio=16, dtype=jnp.float32):
    Cr = max(C // ratio, 1)
    ks = jax.random.split(key, 8)
    s1 = 1.0 / (C ** 0.5)    # fan_in of the first 1x1 convs
    s2 = 1.0 / (Cr ** 0.5)   # fan_in of the second 1x1 convs
    # Layer-1 weights stored as (C_in, C_hidden):   h = pooled @ w1
    # Layer-2 weights stored as (C_out, C_hidden):  out = h @ w2.T   (natural
    # PyTorch Conv2d weight (C_out, C_in, 1, 1), squeezed).
    aw1 = jax.random.uniform(ks[0], (C, Cr), dtype, -s1, s1)
    ab1 = jax.random.uniform(ks[1], (1, Cr), dtype, -s1, s1)
    aw2 = jax.random.uniform(ks[2], (C, Cr), dtype, -s2, s2)
    ab2 = jax.random.uniform(ks[3], (C, 1), dtype, -s2, s2)
    mw1 = jax.random.uniform(ks[4], (C, Cr), dtype, -s1, s1)
    mw2 = jax.random.uniform(ks[5], (C, Cr), dtype, -s2, s2)
    sw1 = jax.random.uniform(ks[6], (C, Cr), dtype, -s1, s1)
    sw2 = jax.random.uniform(ks[7], (C, Cr), dtype, -s2, s2)
    return (aw1, ab1, aw2, ab2, mw1, mw2, sw1, sw2)


def reference(rgb, depth, params):
    # Pure-JAX reference reproducing the PyTorch forward (NCHW).
    aw1, ab1, aw2, ab2, mw1, mw2, sw1, sw2 = params
    avg = jnp.mean(rgb, axis=(2, 3))    # (B, C)
    mx = jnp.max(depth, axis=(2, 3))    # (B, C)
    rgb_fea = jax.nn.sigmoid(jnp.maximum(avg @ aw1 + ab1, 0.0) @ aw2.T + ab2[:, 0])
    depth_fea = jax.nn.sigmoid(jnp.maximum(mx @ mw1, 0.0) @ mw2.T)
    s = rgb_fea + depth_fea
    sum_fea = jax.nn.sigmoid(jnp.maximum(s @ sw1, 0.0) @ sw2.T)
    sf = sum_fea[:, :, None, None]
    return rgb * sf + rgb, depth * sf + depth


if __name__ == "__main__":
    B, C, H, W = 2, 32, 16, 16   # ratio=16 -> hidden channels = 2
    key = jax.random.PRNGKey(0)
    k_rgb, k_depth, k_params = jax.random.split(key, 3)
    rgb = jax.random.normal(k_rgb, (B, C, H, W), jnp.float32)
    depth = jax.random.normal(k_depth, (B, C, H, W), jnp.float32)
    params = init_params(k_params, C, ratio=16)

    rgb_out, depth_out = joint_attention(rgb, depth, params)
    rgb_out = jax.block_until_ready(rgb_out)
    depth_out = jax.block_until_ready(depth_out)

    rgb_ref, depth_ref = reference(rgb, depth, params)
    assert jnp.allclose(rgb_out, rgb_ref, atol=1e-5, rtol=1e-5)
    assert jnp.allclose(depth_out, depth_ref, atol=1e-5, rtol=1e-5)
    print("KERNEL_OK")
</pallas_src>

<mosaic_0001>
module attributes {stable_mosaic.version = 11 : i64} {
  func.func @joint_attention_kernel(%arg0: i32, %arg1: memref<1x32x256xf32, #tpu.memory_space<vmem>>, %arg2: memref<1x32x256xf32, #tpu.memory_space<vmem>>, %arg3: memref<32x2xf32, #tpu.memory_space<vmem>>, %arg4: memref<1x2xf32, #tpu.memory_space<vmem>>, %arg5: memref<32x2xf32, #tpu.memory_space<vmem>>, %arg6: memref<32x1xf32, #tpu.memory_space<vmem>>, %arg7: memref<32x2xf32, #tpu.memory_space<vmem>>, %arg8: memref<32x2xf32, #tpu.memory_space<vmem>>, %arg9: memref<32x2xf32, #tpu.memory_space<vmem>>, %arg10: memref<32x2xf32, #tpu.memory_space<vmem>>, %arg11: memref<1x32x256xf32, #tpu.memory_space<vmem>>, %arg12: memref<1x32x256xf32, #tpu.memory_space<vmem>>) attributes {dimension_semantics = [#tpu.dimension_semantics<parallel>], iteration_bounds = array<i64: 2>, scalar_prefetch = 0 : i64, scratch_operands = 0 : i64, tpu.core_type = #tpu.core_type<tc>, window_params = [{transform_indices = @transform_0, window_bounds = array<i64: 1, 32, 256>}, {transform_indices = @transform_1, window_bounds = array<i64: 1, 32, 256>}, {pipeline_mode = #tpu.pipeline_mode<synchronous>, transform_indices = @transform_2, window_bounds = array<i64: 32, 2>}, {pipeline_mode = #tpu.pipeline_mode<synchronous>, transform_indices = @transform_3, window_bounds = array<i64: 1, 2>}, {pipeline_mode = #tpu.pipeline_mode<synchronous>, transform_indices = @transform_4, window_bounds = array<i64: 32, 2>}, {pipeline_mode = #tpu.pipeline_mode<synchronous>, transform_indices = @transform_5, window_bounds = array<i64: 32, 1>}, {pipeline_mode = #tpu.pipeline_mode<synchronous>, transform_indices = @transform_6, window_bounds = array<i64: 32, 2>}, {pipeline_mode = #tpu.pipeline_mode<synchronous>, transform_indices = @transform_7, window_bounds = array<i64: 32, 2>}, {pipeline_mode = #tpu.pipeline_mode<synchronous>, transform_indices = @transform_8, window_bounds = array<i64: 32, 2>}, {pipeline_mode = #tpu.pipeline_mode<synchronous>, transform_indices = @transform_9, window_bounds = array<i64: 32, 2>}, {transform_indices = @transform_10, window_bounds = array<i64: 1, 32, 256>}, {transform_indices = @transform_11, window_bounds = array<i64: 1, 32, 256>}]} {
    %c0 = arith.constant 0 : index
    %c0_0 = arith.constant 0 : index
    %c0_1 = arith.constant 0 : index
    %0 = vector.load %arg1[%c0, %c0_0, %c0_1] : memref<1x32x256xf32, #tpu.memory_space<vmem>>, vector<1x32x256xf32>
    %c0_2 = arith.constant 0 : index
    %c0_3 = arith.constant 0 : index
    %c0_4 = arith.constant 0 : index
    %1 = vector.load %arg2[%c0_2, %c0_3, %c0_4] : memref<1x32x256xf32, #tpu.memory_space<vmem>>, vector<1x32x256xf32>
    %cst = arith.constant dense<0.000000e+00> : vector<1x32xf32>
    %2 = vector.multi_reduction <add>, %0, %cst [2] : vector<1x32x256xf32> to vector<1x32xf32>
    %3 = vector.shape_cast %2 : vector<1x32xf32> to vector<1x32x1xf32>
    %cst_5 = arith.constant 2.560000e+02 : f32
    %4 = vector.broadcast %cst_5 : f32 to vector<1x32x1xf32>
    %5 = arith.divf %3, %4 : vector<1x32x1xf32>
    %cst_6 = arith.constant dense<0xFF800000> : vector<1x32xf32>
    %6 = vector.multi_reduction <maximumf>, %1, %cst_6 [2] : vector<1x32x256xf32> to vector<1x32xf32>
    %7 = vector.shape_cast %6 : vector<1x32xf32> to vector<1x32x1xf32>
    %c0_7 = arith.constant 0 : index
    %c0_8 = arith.constant 0 : index
    %8 = vector.load %arg3[%c0_7, %c0_8] : memref<32x2xf32, #tpu.memory_space<vmem>>, vector<32x2xf32>
    %c0_9 = arith.constant 0 : index
    %c0_10 = arith.constant 0 : index
    %9 = vector.load %arg4[%c0_9, %c0_10] : memref<1x2xf32, #tpu.memory_space<vmem>>, vector<1x2xf32>
    %10 = vector.shape_cast %8 : vector<32x2xf32> to vector<1x32x2xf32>
    %11 = vector.broadcast %5 : vector<1x32x1xf32> to vector<1x32x2xf32>
    %12 = arith.mulf %11, %10 : vector<1x32x2xf32>
    %cst_11 = arith.constant dense<0.000000e+00> : vector<1x2xf32>
    %13 = vector.multi_reduction <add>, %12, %cst_11 [1] : vector<1x32x2xf32> to vector<1x2xf32>
    %14 = vector.shape_cast %13 : vector<1x2xf32> to vector<1x1x2xf32>
    %15 = vector.shape_cast %9 : vector<1x2xf32> to vector<1x1x2xf32>
    %16 = arith.addf %14, %15 : vector<1x1x2xf32>
    %cst_12 = arith.constant 0.000000e+00 : f32
    %17 = vector.broadcast %cst_12 : f32 to vector<1x1x2xf32>
    %18 = arith.maximumf %16, %17 : vector<1x1x2xf32>
    %c0_13 = arith.constant 0 : index
    %c0_14 = arith.constant 0 : index
    %19 = vector.load %arg5[%c0_13, %c0_14] : memref<32x2xf32, #tpu.memory_space<vmem>>, vector<32x2xf32>
    %c0_15 = arith.constant 0 : index
    %c0_16 = arith.constant 0 : index
    %20 = vector.load %arg6[%c0_15, %c0_16] : memref<32x1xf32, #tpu.memory_space<vmem>>, vector<32x1xf32>
    %21 = vector.shape_cast %19 : vector<32x2xf32> to vector<1x32x2xf32>
    %22 = vector.broadcast %18 : vector<1x1x2xf32> to vector<1x32x2xf32>
    %23 = arith.mulf %22, %21 : vector<1x32x2xf32>
    %cst_17 = arith.constant dense<0.000000e+00> : vector<1x32xf32>
    %24 = vector.multi_reduction <add>, %23, %cst_17 [2] : vector<1x32x2xf32> to vector<1x32xf32>
    %25 = vector.shape_cast %24 : vector<1x32xf32> to vector<1x32x1xf32>
    %26 = vector.shape_cast %20 : vector<32x1xf32> to vector<1x32x1xf32>
    %27 = arith.addf %25, %26 : vector<1x32x1xf32>
    %28 = arith.negf %27 : vector<1x32x1xf32>
    %29 = math.exp %28 : vector<1x32x1xf32>
    %cst_18 = arith.constant 1.000000e+00 : f32
    %30 = vector.broadcast %cst_18 : f32 to vector<1x32x1xf32>
    %31 = arith.addf %30, %29 : vector<1x32x1xf32>
    %32 = arith.divf %30, %31 : vector<1x32x1xf32>
    %c0_19 = arith.constant 0 : index
    %c0_20 = arith.constant 0 : index
    %33 = vector.load %arg7[%c0_19, %c0_20] : memref<32x2xf32, #tpu.memory_space<vmem>>, vector<32x2xf32>
    %34 = vector.shape_cast %33 : vector<32x2xf32> to vector<1x32x2xf32>
    %35 = vector.broadcast %7 : vector<1x32x1xf32> to vector<1x32x2xf32>
    %36 = arith.mulf %35, %34 : vector<1x32x2xf32>
    %cst_21 = arith.constant dense<0.000000e+00> : vector<1x2xf32>
    %37 = vector.multi_reduction <add>, %36, %cst_21 [1] : vector<1x32x2xf32> to vector<1x2xf32>
    %38 = vector.shape_cast %37 : vector<1x2xf32> to vector<1x1x2xf32>
    %cst_22 = arith.constant 0.000000e+00 : f32
    %39 = vector.broadcast %cst_22 : f32 to vector<1x1x2xf32>
    %40 = arith.maximumf %38, %39 : vector<1x1x2xf32>
    %c0_23 = arith.constant 0 : index
    %c0_24 = arith.constant 0 : index
    %41 = vector.load %arg8[%c0_23, %c0_24] : memref<32x2xf32, #tpu.memory_space<vmem>>, vector<32x2xf32>
    %42 = vector.shape_cast %41 : vector<32x2xf32> to vector<1x32x2xf32>
    %43 = vector.broadcast %40 : vector<1x1x2xf32> to vector<1x32x2xf32>
    %44 = arith.mulf %43, %42 : vector<1x32x2xf32>
    %cst_25 = arith.constant dense<0.000000e+00> : vector<1x32xf32>
    %45 = vector.multi_reduction <add>, %44, %cst_25 [2] : vector<1x32x2xf32> to vector<1x32xf32>
    %46 = vector.shape_cast %45 : vector<1x32xf32> to vector<1x32x1xf32>
    %47 = arith.negf %46 : vector<1x32x1xf32>
    %48 = math.exp %47 : vector<1x32x1xf32>
    %cst_26 = arith.constant 1.000000e+00 : f32
    %49 = vector.broadcast %cst_26 : f32 to vector<1x32x1xf32>
    %50 = arith.addf %49, %48 : vector<1x32x1xf32>
    %51 = arith.divf %49, %50 : vector<1x32x1xf32>
    %52 = arith.addf %32, %51 : vector<1x32x1xf32>
    %c0_27 = arith.constant 0 : index
    %c0_28 = arith.constant 0 : index
    %53 = vector.load %arg9[%c0_27, %c0_28] : memref<32x2xf32, #tpu.memory_space<vmem>>, vector<32x2xf32>
    %54 = vector.shape_cast %53 : vector<32x2xf32> to vector<1x32x2xf32>
    %55 = vector.broadcast %52 : vector<1x32x1xf32> to vector<1x32x2xf32>
    %56 = arith.mulf %55, %54 : vector<1x32x2xf32>
    %cst_29 = arith.constant dense<0.000000e+00> : vector<1x2xf32>
    %57 = vector.multi_reduction <add>, %56, %cst_29 [1] : vector<1x32x2xf32> to vector<1x2xf32>
    %58 = vector.shape_cast %57 : vector<1x2xf32> to vector<1x1x2xf32>
    %cst_30 = arith.constant 0.000000e+00 : f32
    %59 = vector.broadcast %cst_30 : f32 to vector<1x1x2xf32>
    %60 = arith.maximumf %58, %59 : vector<1x1x2xf32>
    %c0_31 = arith.constant 0 : index
    %c0_32 = arith.constant 0 : index
    %61 = vector.load %arg10[%c0_31, %c0_32] : memref<32x2xf32, #tpu.memory_space<vmem>>, vector<32x2xf32>
    %62 = vector.shape_cast %61 : vector<32x2xf32> to vector<1x32x2xf32>
    %63 = vector.broadcast %60 : vector<1x1x2xf32> to vector<1x32x2xf32>
    %64 = arith.mulf %63, %62 : vector<1x32x2xf32>
    %cst_33 = arith.constant dense<0.000000e+00> : vector<1x32xf32>
    %65 = vector.multi_reduction <add>, %64, %cst_33 [2] : vector<1x32x2xf32> to vector<1x32xf32>
    %66 = vector.shape_cast %65 : vector<1x32xf32> to vector<1x32x1xf32>
    %67 = arith.negf %66 : vector<1x32x1xf32>
    %68 = math.exp %67 : vector<1x32x1xf32>
    %cst_34 = arith.constant 1.000000e+00 : f32
    %69 = vector.broadcast %cst_34 : f32 to vector<1x32x1xf32>
    %70 = arith.addf %69, %68 : vector<1x32x1xf32>
    %71 = arith.divf %69, %70 : vector<1x32x1xf32>
    %cst_35 = arith.constant 1.000000e+00 : f32
    %72 = vector.broadcast %cst_35 : f32 to vector<1x32x1xf32>
    %73 = arith.addf %71, %72 : vector<1x32x1xf32>
    %74 = vector.broadcast %73 : vector<1x32x1xf32> to vector<1x32x256xf32>
    %75 = arith.mulf %0, %74 : vector<1x32x256xf32>
    %c0_36 = arith.constant 0 : index
    %c0_37 = arith.constant 0 : index
    %c0_38 = arith.constant 0 : index
    %76 = vector.load %arg11[%c0_36, %c0_37, %c0_38] : memref<1x32x256xf32, #tpu.memory_space<vmem>>, vector<1x32x256xf32>
    tpu.vector_store %arg11[%c0_36, %c0_37, %c0_38], %75 {strides = array<i32>} : memref<1x32x256xf32, #tpu.memory_space<vmem>>, vector<1x32x256xf32>,
    %77 = vector.broadcast %73 : vector<1x32x1xf32> to vector<1x32x256xf32>
    %78 = arith.mulf %1, %77 : vector<1x32x256xf32>
    %c0_39 = arith.constant 0 : index
    %c0_40 = arith.constant 0 : index
    %c0_41 = arith.constant 0 : index
    %79 = vector.load %arg12[%c0_39, %c0_40, %c0_41] : memref<1x32x256xf32, #tpu.memory_space<vmem>>, vector<1x32x256xf32>
    tpu.vector_store %arg12[%c0_39, %c0_40, %c0_41], %78 {strides = array<i32>} : memref<1x32x256xf32, #tpu.memory_space<vmem>>, vector<1x32x256xf32>,
    return
  }
  func.func @transform_0(%arg0: i32) -> (i32, i32, i32) {
    %c0_i32 = arith.constant 0 : i32
    %c0_i32_0 = arith.constant 0 : i32
    %c0_i32_1 = arith.constant 0 : i32
    return %arg0, %c0_i32, %c0_i32_0 : i32, i32, i32
  }
  func.func @transform_1(%arg0: i32) -> (i32, i32, i32) {
    %c0_i32 = arith.constant 0 : i32
    %c0_i32_0 = arith.constant 0 : i32
    %c0_i32_1 = arith.constant 0 : i32
    return %arg0, %c0_i32, %c0_i32_0 : i32, i32, i32
  }
  func.func @transform_2(%arg0: i32) -> (i32, i32) {
    %c0_i32 = arith.constant 0 : i32
    %c0_i32_0 = arith.constant 0 : i32
    %c0_i32_1 = arith.constant 0 : i32
    return %c0_i32, %c0_i32_0 : i32, i32
  }
  func.func @transform_3(%arg0: i32) -> (i32, i32) {
    %c0_i32 = arith.constant 0 : i32
    %c0_i32_0 = arith.constant 0 : i32
    %c0_i32_1 = arith.constant 0 : i32
    return %c0_i32, %c0_i32_0 : i32, i32
  }
  func.func @transform_4(%arg0: i32) -> (i32, i32) {
    %c0_i32 = arith.constant 0 : i32
    %c0_i32_0 = arith.constant 0 : i32
    %c0_i32_1 = arith.constant 0 : i32
    return %c0_i32, %c0_i32_0 : i32, i32
  }
  func.func @transform_5(%arg0: i32) -> (i32, i32) {
    %c0_i32 = arith.constant 0 : i32
    %c0_i32_0 = arith.constant 0 : i32
    %c0_i32_1 = arith.constant 0 : i32
    return %c0_i32, %c0_i32_0 : i32, i32
  }
  func.func @transform_6(%arg0: i32) -> (i32, i32) {
    %c0_i32 = arith.constant 0 : i32
    %c0_i32_0 = arith.constant 0 : i32
    %c0_i32_1 = arith.constant 0 : i32
    return %c0_i32, %c0_i32_0 : i32, i32
  }
  func.func @transform_7(%arg0: i32) -> (i32, i32) {
    %c0_i32 = arith.constant 0 : i32
    %c0_i32_0 = arith.constant 0 : i32
    %c0_i32_1 = arith.constant 0 : i32
    return %c0_i32, %c0_i32_0 : i32, i32
  }
  func.func @transform_8(%arg0: i32) -> (i32, i32) {
    %c0_i32 = arith.constant 0 : i32
    %c0_i32_0 = arith.constant 0 : i32
    %c0_i32_1 = arith.constant 0 : i32
    return %c0_i32, %c0_i32_0 : i32, i32
  }
  func.func @transform_9(%arg0: i32) -> (i32, i32) {
    %c0_i32 = arith.constant 0 : i32
    %c0_i32_0 = arith.constant 0 : i32
    %c0_i32_1 = arith.constant 0 : i32
    return %c0_i32, %c0_i32_0 : i32, i32
  }
  func.func @transform_10(%arg0: i32) -> (i32, i32, i32) {
    %c0_i32 = arith.constant 0 : i32
    %c0_i32_0 = arith.constant 0 : i32
    %c0_i32_1 = arith.constant 0 : i32
    return %arg0, %c0_i32, %c0_i32_0 : i32, i32, i32
  }
  func.func @transform_11(%arg0: i32) -> (i32, i32, i32) {
    %c0_i32 = arith.constant 0 : i32
    %c0_i32_0 = arith.constant 0 : i32
    %c0_i32_1 = arith.constant 0 : i32
    return %arg0, %c0_i32, %c0_i32_0 : i32, i32, i32
  }
}

</mosaic_0001>

<llo_original>
// kernel: tpu_custom_call.1
$region0: #{tpu_custom_call.1}
  #allocation0 [shape = 'u32[]', space=smem, size = 0x4, offset = 0x4, fixed_abs, tag = 'smem constant byte address 0x4 - core index']
  #allocation1 [shape = 'u32[144,128]{1,0:T(1,128)}', space=vmem, size = 0x12000, scoped, tag = 'internal scratch']
  %s0 = inlined_call_operand.vmem [shape: f32[2,32,256], index: 0, kind: input, shape index: {}]
  %s1 = inlined_call_operand.hbm [shape: f32[2,32,256], index: 1, kind: input, shape index: {}]
  %s2 = inlined_call_operand.vmem [shape: f32[32,2], index: 2, kind: input, shape index: {}]
  %s3 = inlined_call_operand.vmem [shape: f32[1,2], index: 3, kind: input, shape index: {}]
  %s4 = inlined_call_operand.vmem [shape: f32[32,2], index: 4, kind: input, shape index: {}]
  %s5 = inlined_call_operand.vmem [shape: f32[32,1], index: 5, kind: input, shape index: {}]
  %s6 = inlined_call_operand.vmem [shape: f32[32,2], index: 6, kind: input, shape index: {}]
  %s7 = inlined_call_operand.vmem [shape: f32[32,2], index: 7, kind: input, shape index: {}]
  %s8 = inlined_call_operand.vmem [shape: f32[32,2], index: 8, kind: input, shape index: {}]
  %s9 = inlined_call_operand.vmem [shape: f32[32,2], index: 9, kind: input, shape index: {}]
  %s10 = inlined_call_operand.hbm [shape: f32[2,32,256], index: 10, kind: output, shape index: {0}]
  %s11 = inlined_call_operand.hbm [shape: f32[2,32,256], index: 11, kind: output, shape index: {1}]
  %12 = xla_tuple %s10, %s11
  %s13 = sld [smem:[#allocation0]]
  $region85: #{tpu_custom_call.1} parent=0
    _
  %s15 = ssub.s32 1, %s13
  %s16 = scalar_select 0, %s15, %s13
  $region1: #{tpu_custom_call.1} parent=0
    #allocation2 [shape = 'u8[65536]{0}', space=vmem, size = 0x10000, scoped, tag = 'input window, operand 1']
    #allocation3 [shape = 's32[2]{0}', space=sflag, size = 0x8, scoped, tag = 'scoped memory for tpu_custom_call.1']
    #allocation4 [shape = 's32[2]{0}', space=sflag, size = 0x8, scoped, tag = 'scoped memory for tpu_custom_call.1']
    #allocation5 [shape = 'u8[65536]{0}', space=vmem, size = 0x10000, scoped, tag = 'output window, operand 0']
    #allocation6 [shape = 'u8[65536]{0}', space=vmem, size = 0x10000, scoped, tag = 'output window, operand 1']
    #allocation7 [shape = 's32[2]{0}', space=sflag, size = 0x8, scoped, tag = 'scoped memory for tpu_custom_call.1']
    %17 = vsyncpa [#allocation3], 0
    %s18 = scalar_lea.sflag [#allocation3], 1
    %19 = vsyncpa %s18, 0
    %20 = vsyncpa [#allocation4], 0
    %s21 = scalar_lea.sflag [#allocation4], 1
    %22 = vsyncpa %s21, 0
    %23 = vsyncpa [#allocation7], 0
    %s24 = scalar_lea.sflag [#allocation7], 1
    %25 = vsyncpa %s24, 0
    loop: start=0, step=1, limit=4
    $region2: #{tpu_custom_call.1} parent=1 // loop_pre_header
      _
    $region3: #{tpu_custom_call.1} parent=1 // loop_header
      %s27 = sphi 0, %s31
      %p28 = scmp.ge.s32.totalorder %s27, 4
      %s37 = sphi 0, %s39
      %s40 = sphi 0, %s37
      %s41 = sphi 0, %s40
      %s57 = sphi 0, %s41
      %s63 = sphi 0, %s65
      %s66 = sphi 0, %s63
      %s67 = sphi 0, %s66
      %s83 = sphi 0, %s67
      %s87 = sphi 0, %s87
      %s89 = sphi 0, %s87
      %s90 = sphi 0, %s89
      %s104 = sphi 0, %s90
      %s108 = sphi 0, %s108
      %s110 = sphi 0, %s108
      %s111 = sphi 0, %s110
      %s125 = sphi 0, %s111
      %s129 = sphi 0, %s129
      %s131 = sphi 0, %s129
      %s132 = sphi 0, %s131
      %s146 = sphi 0, %s132
      %s150 = sphi 0, %s150
      %s152 = sphi 0, %s150
      %s153 = sphi 0, %s152
      %s167 = sphi 0, %s153
      %s171 = sphi 0, %s171
      %s173 = sphi 0, %s171
      %s174 = sphi 0, %s173
      %s188 = sphi 0, %s174
      %s192 = sphi 0, %s192
      %s194 = sphi 0, %s192
      %s195 = sphi 0, %s194
      %s209 = sphi 0, %s195
      %s213 = sphi 0, %s213
      %s215 = sphi 0, %s213
      %s216 = sphi 0, %s215
      %s230 = sphi 0, %s216
      %s234 = sphi 0, %s234
      %s236 = sphi 0, %s234
      %s237 = sphi 0, %s236
      %s251 = sphi 0, %s237
      %s257 = sphi 0, %s259
      %s260 = sphi 0, %s257
      %s261 = sphi 0, %s260
      %s277 = sphi 0, %s261
      %s283 = sphi 0, %s285
      %s286 = sphi 0, %s283
      %s287 = sphi 0, %s286
      %s303 = sphi 0, %s287
    $region4: #{tpu_custom_call.1} parent=1 // loop_header_branch
      %30 = sbr.rel (%p28) target = $region8
    $region5: #{tpu_custom_call.1} parent=1 // loop_body
      %s32 = ssub.s32 %s27, 1
      %s33 = ssub.s32 %s27, 2
      %s34 = sadd.s32 %s27, 1
      %s35 = ssub.s32 %s27, %s34
      %p36 = scmp.eq.s32.totalorder %s35, 0
      %s38 = sadd.s32 %s37, 1
      %s39 = scalar_select %p36, %s37, %s38
      %p42 = pneg %p36
      %p43 = scmp.eq.s32.totalorder %s27, 1
      %p44 = por %p42, %p43
      %p45 = scmp.ne.s32.totalorder %s37, %s40
      %p46 = scmp.eq.s32.totalorder %s27, 0
      %p47 = por %p45, %p46
      %p48 = scmp.ne.s32.totalorder %s37, %s40
      %p49 = scmp.eq.s32.totalorder %s32, 1
      %p50 = por %p48, %p49
      %p51 = scmp.ne.s32.totalorder %s40, %s41
      %p52 = scmp.eq.s32.totalorder %s32, 0
      %p53 = por %p51, %p52
      %p54 = scmp.ne.s32.totalorder %s40, %s41
      %p55 = scmp.eq.s32.totalorder %s33, 1
      %p56 = por %p54, %p55
      %p58 = scmp.ne.s32.totalorder %s41, %s57
      %p59 = scmp.eq.s32.totalorder %s33, 0
      %p60 = por %p58, %p59
      %s61 = ssub.s32 %s27, %s34
      %p62 = scmp.eq.s32.totalorder %s61, 0
      %s64 = sadd.s32 %s63, 1
      %s65 = scalar_select %p62, %s63, %s64
      %p68 = pneg %p62
      %p69 = scmp.eq.s32.totalorder %s27, 1
      %p70 = por %p68, %p69
      %p71 = scmp.ne.s32.totalorder %s63, %s66
      %p72 = scmp.eq.s32.totalorder %s27, 0
      %p73 = por %p71, %p72
      %p74 = scmp.ne.s32.totalorder %s63, %s66
      %p75 = scmp.eq.s32.totalorder %s32, 1
      %p76 = por %p74, %p75
      %p77 = scmp.ne.s32.totalorder %s66, %s67
      %p78 = scmp.eq.s32.totalorder %s32, 0
      %p79 = por %p77, %p78
      %p80 = scmp.ne.s32.totalorder %s66, %s67
      %p81 = scmp.eq.s32.totalorder %s33, 1
      %p82 = por %p80, %p81
      %p84 = scmp.ne.s32.totalorder %s67, %s83
      %p85 = scmp.eq.s32.totalorder %s33, 0
      %p86 = por %p84, %p85
      %s88 = sadd.s32 %s87, 1
      %p91 = scmp.eq.s32.totalorder %s27, 1
      %p92 = scmp.ne.s32.totalorder %s87, %s89
      %p93 = scmp.eq.s32.totalorder %s27, 0
      %p94 = por %p92, %p93
      %p95 = scmp.ne.s32.totalorder %s87, %s89
      %p96 = scmp.eq.s32.totalorder %s32, 1
      %p97 = por %p95, %p96
      %p98 = scmp.ne.s32.totalorder %s89, %s90
      %p99 = scmp.eq.s32.totalorder %s32, 0
      %p100 = por %p98, %p99
      %p101 = scmp.ne.s32.totalorder %s89, %s90
      %p102 = scmp.eq.s32.totalorder %s33, 1
      %p103 = por %p101, %p102
      %p105 = scmp.ne.s32.totalorder %s90, %s104
      %p106 = scmp.eq.s32.totalorder %s33, 0
      %p107 = por %p105, %p106
      %s109 = sadd.s32 %s108, 1
      %p112 = scmp.eq.s32.totalorder %s27, 1
      %p113 = scmp.ne.s32.totalorder %s108, %s110
      %p114 = scmp.eq.s32.totalorder %s27, 0
      %p115 = por %p113, %p114
      %p116 = scmp.ne.s32.totalorder %s108, %s110
      %p117 = scmp.eq.s32.totalorder %s32, 1
      %p118 = por %p116, %p117
      %p119 = scmp.ne.s32.totalorder %s110, %s111
      %p120 = scmp.eq.s32.totalorder %s32, 0
      %p121 = por %p119, %p120
      %p122 = scmp.ne.s32.totalorder %s110, %s111
      %p123 = scmp.eq.s32.totalorder %s33, 1
      %p124 = por %p122, %p123
      %p126 = scmp.ne.s32.totalorder %s111, %s125
      %p127 = scmp.eq.s32.totalorder %s33, 0
      %p128 = por %p126, %p127
      %s130 = sadd.s32 %s129, 1
      %p133 = scmp.eq.s32.totalorder %s27, 1
      %p134 = scmp.ne.s32.totalorder %s129, %s131
      %p135 = scmp.eq.s32.totalorder %s27, 0
      %p136 = por %p134, %p135
      %p137 = scmp.ne.s32.totalorder %s129, %s131
      %p138 = scmp.eq.s32.totalorder %s32, 1
      %p139 = por %p137, %p138
      %p140 = scmp.ne.s32.totalorder %s131, %s132
      %p141 = scmp.eq.s32.totalorder %s32, 0
      %p142 = por %p140, %p141
      %p143 = scmp.ne.s32.totalorder %s131, %s132
      %p144 = scmp.eq.s32.totalorder %s33, 1
      %p145 = por %p143, %p144
      %p147 = scmp.ne.s32.totalorder %s132, %s146
      %p148 = scmp.eq.s32.totalorder %s33, 0
      %p149 = por %p147, %p148
      %s151 = sadd.s32 %s150, 1
      %p154 = scmp.eq.s32.totalorder %s27, 1
      %p155 = scmp.ne.s32.totalorder %s150, %s152
      %p156 = scmp.eq.s32.totalorder %s27, 0
      %p157 = por %p155, %p156
      %p158 = scmp.ne.s32.totalorder %s150, %s152
      %p159 = scmp.eq.s32.totalorder %s32, 1
      %p160 = por %p158, %p159
      %p161 = scmp.ne.s32.totalorder %s152, %s153
      %p162 = scmp.eq.s32.totalorder %s32, 0
      %p163 = por %p161, %p162
      %p164 = scmp.ne.s32.totalorder %s152, %s153
      %p165 = scmp.eq.s32.totalorder %s33, 1
      %p166 = por %p164, %p165
      %p168 = scmp.ne.s32.totalorder %s153, %s167
      %p169 = scmp.eq.s32.totalorder %s33, 0
      %p170 = por %p168, %p169
      %s172 = sadd.s32 %s171, 1
      %p175 = scmp.eq.s32.totalorder %s27, 1
      %p176 = scmp.ne.s32.totalorder %s171, %s173
      %p177 = scmp.eq.s32.totalorder %s27, 0
      %p178 = por %p176, %p177
      %p179 = scmp.ne.s32.totalorder %s171, %s173
      %p180 = scmp.eq.s32.totalorder %s32, 1
      %p181 = por %p179, %p180
      %p182 = scmp.ne.s32.totalorder %s173, %s174
      %p183 = scmp.eq.s32.totalorder %s32, 0
      %p184 = por %p182, %p183
      %p185 = scmp.ne.s32.totalorder %s173, %s174
      %p186 = scmp.eq.s32.totalorder %s33, 1
      %p187 = por %p185, %p186
      %p189 = scmp.ne.s32.totalorder %s174, %s188
      %p190 = scmp.eq.s32.totalorder %s33, 0
      %p191 = por %p189, %p190
      %s193 = sadd.s32 %s192, 1
      %p196 = scmp.eq.s32.totalorder %s27, 1
      %p197 = scmp.ne.s32.totalorder %s192, %s194
      %p198 = scmp.eq.s32.totalorder %s27, 0
      %p199 = por %p197, %p198
      %p200 = scmp.ne.s32.totalorder %s192, %s194
      %p201 = scmp.eq.s32.totalorder %s32, 1
      %p202 = por %p200, %p201
      %p203 = scmp.ne.s32.totalorder %s194, %s195
      %p204 = scmp.eq.s32.totalorder %s32, 0
      %p205 = por %p203, %p204
      %p206 = scmp.ne.s32.totalorder %s194, %s195
      %p207 = scmp.eq.s32.totalorder %s33, 1
      %p208 = por %p206, %p207
      %p210 = scmp.ne.s32.totalorder %s195, %s209
      %p211 = scmp.eq.s32.totalorder %s33, 0
      %p212 = por %p210, %p211
      %s214 = sadd.s32 %s213, 1
      %p217 = scmp.eq.s32.totalorder %s27, 1
      %p218 = scmp.ne.s32.totalorder %s213, %s215
      %p219 = scmp.eq.s32.totalorder %s27, 0
      %p220 = por %p218, %p219
      %p221 = scmp.ne.s32.totalorder %s213, %s215
      %p222 = scmp.eq.s32.totalorder %s32, 1
      %p223 = por %p221, %p222
      %p224 = scmp.ne.s32.totalorder %s215, %s216
      %p225 = scmp.eq.s32.totalorder %s32, 0
      %p226 = por %p224, %p225
      %p227 = scmp.ne.s32.totalorder %s215, %s216
      %p228 = scmp.eq.s32.totalorder %s33, 1
      %p229 = por %p227, %p228
      %p231 = scmp.ne.s32.totalorder %s216, %s230
      %p232 = scmp.eq.s32.totalorder %s33, 0
      %p233 = por %p231, %p232
      %s235 = sadd.s32 %s234, 1
      %p238 = scmp.eq.s32.totalorder %s27, 1
      %p239 = scmp.ne.s32.totalorder %s234, %s236
      %p240 = scmp.eq.s32.totalorder %s27, 0
      %p241 = por %p239, %p240
      %p242 = scmp.ne.s32.totalorder %s234, %s236
      %p243 = scmp.eq.s32.totalorder %s32, 1
      %p244 = por %p242, %p243
      %p245 = scmp.ne.s32.totalorder %s236, %s237
      %p246 = scmp.eq.s32.totalorder %s32, 0
      %p247 = por %p245, %p246
      %p248 = scmp.ne.s32.totalorder %s236, %s237
      %p249 = scmp.eq.s32.totalorder %s33, 1
      %p250 = por %p248, %p249
      %p252 = scmp.ne.s32.totalorder %s237, %s251
      %p253 = scmp.eq.s32.totalorder %s33, 0
      %p254 = por %p252, %p253
      %s255 = ssub.s32 %s27, %s34
      %p256 = scmp.eq.s32.totalorder %s255, 0
      %s258 = sadd.s32 %s257, 1
      %s259 = scalar_select %p256, %s257, %s258
      %p262 = pneg %p256
      %p263 = scmp.eq.s32.totalorder %s27, 1
      %p264 = por %p262, %p263
      %p265 = scmp.ne.s32.totalorder %s257, %s260
      %p266 = scmp.eq.s32.totalorder %s27, 0
      %p267 = por %p265, %p266
      %p268 = scmp.ne.s32.totalorder %s257, %s260
      %p269 = scmp.eq.s32.totalorder %s32, 1
      %p270 = por %p268, %p269
      %p271 = scmp.ne.s32.totalorder %s260, %s261
      %p272 = scmp.eq.s32.totalorder %s32, 0
      %p273 = por %p271, %p272
      %p274 = scmp.ne.s32.totalorder %s260, %s261
      %p275 = scmp.eq.s32.totalorder %s33, 1
      %p276 = por %p274, %p275
      %p278 = scmp.ne.s32.totalorder %s261, %s277
      %p279 = scmp.eq.s32.totalorder %s33, 0
      %p280 = por %p278, %p279
      %s281 = ssub.s32 %s27, %s34
      %p282 = scmp.eq.s32.totalorder %s281, 0
      %s284 = sadd.s32 %s283, 1
      %s285 = scalar_select %p282, %s283, %s284
      %p288 = pneg %p282
      %p289 = scmp.eq.s32.totalorder %s27, 1
      %p290 = por %p288, %p289
      %p291 = scmp.ne.s32.totalorder %s283, %s286
      %p292 = scmp.eq.s32.totalorder %s27, 0
      %p293 = por %p291, %p292
      %p294 = scmp.ne.s32.totalorder %s283, %s286
      %p295 = scmp.eq.s32.totalorder %s32, 1
      %p296 = por %p294, %p295
      %p297 = scmp.ne.s32.totalorder %s286, %s287
      %p298 = scmp.eq.s32.totalorder %s32, 0
      %p299 = por %p297, %p298
      %p300 = scmp.ne.s32.totalorder %s286, %s287
      %p301 = scmp.eq.s32.totalorder %s33, 1
      %p302 = por %p300, %p301
      %p304 = scmp.ne.s32.totalorder %s287, %s303
      %p305 = scmp.eq.s32.totalorder %s33, 0
      %p306 = por %p304, %p305
      %p307 = scmp.le.s32.totalorder 1, %s27
      %p308 = scmp.lt.s32.totalorder %s27, 3
      %p309 = pnand %p307, %p308
      %p310 = pneg %p309
      // Predicated region
      $region9: #{tpu_custom_call.1} parent=5 // pred_check
        _
      $region10: #{tpu_custom_call.1} parent=5 // pred_check_branch
        %312 = sbr.rel (%p309) target = $region12
      $region11: #{tpu_custom_call.1} parent=5 // pred_region
        %s313 = ssub.s32 %s27, 1
        // Predicated region
        $region13: #{tpu_custom_call.1} parent=11 // pred_check
          %p314 = pneg %p100
        $region14: #{tpu_custom_call.1} parent=11 // pred_check_branch
          %316 = sbr.rel (%p314) target = $region16
        $region15: #{tpu_custom_call.1} parent=11 // pred_region
          _
        $region16: #{tpu_custom_call.1} parent=11 // pred_fallthru
          _
        // Predicated region
        $region17: #{tpu_custom_call.1} parent=11 // pred_check
          %p317 = pneg %p121
        $region18: #{tpu_custom_call.1} parent=11 // pred_check_branch
          %319 = sbr.rel (%p317) target = $region20
        $region19: #{tpu_custom_call.1} parent=11 // pred_region
          _
        $region20: #{tpu_custom_call.1} parent=11 // pred_fallthru
          _
        // Predicated region
        $region21: #{tpu_custom_call.1} parent=11 // pred_check
          %p320 = pneg %p142
        $region22: #{tpu_custom_call.1} parent=11 // pred_check_branch
          %322 = sbr.rel (%p320) target = $region24
        $region23: #{tpu_custom_call.1} parent=11 // pred_region
          _
        $region24: #{tpu_custom_call.1} parent=11 // pred_fallthru
          _
        // Predicated region
        $region25: #{tpu_custom_call.1} parent=11 // pred_check
          %p323 = pneg %p163
        $region26: #{tpu_custom_call.1} parent=11 // pred_check_branch
          %325 = sbr.rel (%p323) target = $region28
        $region27: #{tpu_custom_call.1} parent=11 // pred_region
          _
        $region28: #{tpu_custom_call.1} parent=11 // pred_fallthru
          _
        // Predicated region
        $region29: #{tpu_custom_call.1} parent=11 // pred_check
          %p326 = pneg %p184
        $region30: #{tpu_custom_call.1} parent=11 // pred_check_branch
          %328 = sbr.rel (%p326) target = $region32
        $region31: #{tpu_custom_call.1} parent=11 // pred_region
          _
        $region32: #{tpu_custom_call.1} parent=11 // pred_fallthru
          _
        // Predicated region
        $region33: #{tpu_custom_call.1} parent=11 // pred_check
          %p329 = pneg %p205
        $region34: #{tpu_custom_call.1} parent=11 // pred_check_branch
          %331 = sbr.rel (%p329) target = $region36
        $region35: #{tpu_custom_call.1} parent=11 // pred_region
          _
        $region36: #{tpu_custom_call.1} parent=11 // pred_fallthru
          _
        // Predicated region
        $region37: #{tpu_custom_call.1} parent=11 // pred_check
          %p332 = pneg %p226
        $region38: #{tpu_custom_call.1} parent=11 // pred_check_branch
          %334 = sbr.rel (%p332) target = $region40
        $region39: #{tpu_custom_call.1} parent=11 // pred_region
          _
        $region40: #{tpu_custom_call.1} parent=11 // pred_fallthru
          _
        // Predicated region
        $region41: #{tpu_custom_call.1} parent=11 // pred_check
          %p335 = pneg %p247
        $region42: #{tpu_custom_call.1} parent=11 // pred_check_branch
          %337 = sbr.rel (%p335) target = $region44
        $region43: #{tpu_custom_call.1} parent=11 // pred_region
          _
        $region44: #{tpu_custom_call.1} parent=11 // pred_fallthru
          _
      $region12: #{tpu_custom_call.1} parent=5 // pred_fallthru
        _
      %p338 = scmp.lt.s32.totalorder %s27, 2
      // Predicated region
      $region45: #{tpu_custom_call.1} parent=5 // pred_check
        %p339 = pneg %p338
      $region46: #{tpu_custom_call.1} parent=5 // pred_check_branch
        %341 = sbr.rel (%p339) target = $region48
      $region47: #{tpu_custom_call.1} parent=5 // pred_region
        // Predicated region
        $region49: #{tpu_custom_call.1} parent=47 // pred_check
          %p342 = pneg %p47
        $region50: #{tpu_custom_call.1} parent=47 // pred_check_branch
          %344 = sbr.rel (%p342) target = $region52
        $region51: #{tpu_custom_call.1} parent=47 // pred_region
          %p345 = scmp.lt.s32.totalorder %s27, 1
          %s346 = scalar_select %p345, %s27, 1
          %s347 = smul.addr %s346, 8
          %s348 = smul.addr %s347, 8
          %s349 = scalar_lea.vmem %s0, %s348
        $region52: #{tpu_custom_call.1} parent=47 // pred_fallthru
          _
        // Predicated region
        $region53: #{tpu_custom_call.1} parent=47 // pred_check
          %p350 = pneg %p73
        $region54: #{tpu_custom_call.1} parent=47 // pred_check_branch
          %352 = sbr.rel (%p350) target = $region56
        $region55: #{tpu_custom_call.1} parent=47 // pred_region
          %s353 = sand.u32 %s63, 1
          %s354 = scalar_lea.sflag [#allocation3], %s353
          %s355 = sand.u32 %s63, 1
          %s356 = smul.addr %s355, 64
          %s357 = scalar_lea.vmem [#allocation2], %s356
          %s359 = ssub.s32 1024, 1024
          %360 = vsyncadd %s354, %s359
          %s361 = smul.addr %s27, 8
          %s362 = smul.addr %s361, 128
          %s363 = scalar_lea.hbm %s1, %s362
          %s364 = sshll.u32 %s357, 4
          %s365 = int_to_ptr.vmem [resolvable:$true] %s364
          %370 = dma.hbm_to_vmem [thread:$0]  %s363, 1024, %s365, %s354, 256, 256, 16
        $region56: #{tpu_custom_call.1} parent=47 // pred_fallthru
          _
      $region48: #{tpu_custom_call.1} parent=5 // pred_fallthru
        _
      %p371 = scmp.le.s32.totalorder 1, %s27
      %p372 = scmp.lt.s32.totalorder %s27, 3
      %p373 = pnand %p371, %p372
      %p374 = pneg %p373
      // Predicated region
      $region57: #{tpu_custom_call.1} parent=5 // pred_check
        _
      $region58: #{tpu_custom_call.1} parent=5 // pred_check_branch
        %376 = sbr.rel (%p373) target = $region60
      $region59: #{tpu_custom_call.1} parent=5 // pred_region
        %s377 = ssub.s32 %s27, 1
        %s378 = sand.u32 %s66, 1
        %s379 = scalar_lea.sflag [#allocation3], %s378
        %s380 = sand.u32 %s66, 1
        %s381 = smul.addr %s380, 64
        %s382 = scalar_lea.vmem [#allocation2], %s381
        // Predicated region
        $region61: #{tpu_custom_call.1} parent=59 // pred_check
          %p383 = pneg %p79
        $region62: #{tpu_custom_call.1} parent=59 // pred_check_branch
          %385 = sbr.rel (%p383) target = $region64
        $region63: #{tpu_custom_call.1} parent=59 // pred_region
          %386 = dma.done %s379, 1024
        $region64: #{tpu_custom_call.1} parent=59 // pred_fallthru
          _
        %p387 = scmp.lt.s32.totalorder %s32, 1
        %s388 = scalar_select %p387, %s32, 1
        %s389 = smul.addr %s388, 8
        %s390 = smul.addr %s389, 8
        %s391 = scalar_lea.vmem %s0, %s390
        %p392 = pneg %p53
        %p393 = pneg %p50
        %s394 = sand.u32 %s66, 1
        %s395 = scalar_lea.sflag [#allocation3], %s394
        %s396 = sand.u32 %s66, 1
        %s397 = smul.addr %s396, 64
        %s398 = scalar_lea.vmem [#allocation2], %s397
        %p399 = pneg %p79
        %p400 = pneg %p76
        %p401 = pneg %p100
        %p402 = pneg %p97
        %p403 = pneg %p121
        %p404 = pneg %p118
        %p405 = pneg %p142
        %p406 = pneg %p139
        %p407 = pneg %p163
        %p408 = pneg %p160
        %p409 = pneg %p184
        %p410 = pneg %p181
        %p411 = pneg %p205
        %p412 = pneg %p202
        %p413 = pneg %p226
        %p414 = pneg %p223
        %p415 = pneg %p247
        %p416 = pneg %p244
        %p417 = pneg %p273
        %p418 = pneg %p270
        %s419 = sand.u32 %s260, 1
        %s420 = scalar_lea.sflag [#allocation4], %s419
        %s421 = sand.u32 %s260, 1
        %s422 = smul.addr %s421, 64
        %s423 = scalar_lea.vmem [#allocation5], %s422
        %p424 = pneg %p299
        %p425 = pneg %p296
        %s426 = sand.u32 %s286, 1
        %s427 = scalar_lea.sflag [#allocation7], %s426
        %s428 = sand.u32 %s286, 1
        %s429 = smul.addr %s428, 64
        %s430 = scalar_lea.vmem [#allocation6], %s429
        %p431 = scmp.lt.s32.totalorder %s32, 1
        %s432 = scalar_select %p431, %s32, 1
        %s433 = smul.addr %s432, 8
        %s434 = smul.addr %s433, 8
        %s435 = scalar_lea.vmem %s0, %s434
        %v436 = vld [vmem:[%s435] sm:$0xff]
        %v437 = vld [vmem:[%s435 + $0x8] sm:$0xff]
        %v438 = vld [vmem:[%s435 + $0x10] sm:$0xff]
        %v439 = vld [vmem:[%s435 + $0x18] sm:$0xff]
        %v440 = vld [vmem:[%s435 + $0x20] sm:$0xff]
        %v441 = vld [vmem:[%s435 + $0x28] sm:$0xff]
        %v442 = vld [vmem:[%s435 + $0x30] sm:$0xff]
        %v443 = vld [vmem:[%s435 + $0x38] sm:$0xff]
        %v444 = vld [vmem:[%s382] sm:$0xff]
        %v445 = vld [vmem:[%s382 + $0x8] sm:$0xff]
        %v446 = vld [vmem:[%s382 + $0x10] sm:$0xff]
        %v447 = vld [vmem:[%s382 + $0x18] sm:$0xff]
        %v448 = vld [vmem:[%s382 + $0x20] sm:$0xff]
        %v449 = vld [vmem:[%s382 + $0x28] sm:$0xff]
        %v450 = vld [vmem:[%s382 + $0x30] sm:$0xff]
        %v451 = vld [vmem:[%s382 + $0x38] sm:$0xff]
        %v452 = vadd.f32 %v436, %v437
        %453 = vadd.xlane.f32.xlu0 %v452
        %v454 = vpop.xlane.xlu0 %453
        %v455 = vadd.f32 %v438, %v439
        %456 = vadd.xlane.f32.xlu0 %v455
        %v457 = vpop.xlane.xlu0 %456
        %v458 = vadd.f32 %v440, %v441
        %459 = vadd.xlane.f32.xlu0 %v458
        %v460 = vpop.xlane.xlu0 %459
        %v461 = vadd.f32 %v442, %v443
        %462 = vadd.xlane.f32.xlu0 %v461
        %v463 = vpop.xlane.xlu0 %462
        %v464 = vrcp.pop 256.0
        %v465 = vmul.f32 %v454, %v464
        %v466 = vmul.f32 %v457, %v464
        %v467 = vmul.f32 %v460, %v464
        %v468 = vmul.f32 %v463, %v464
        %v469 = vmax.f32 %v444, %v445
        %470 = vmax.xlane.f32.xlu0 %v469
        %v471 = vpop.xlane.xlu0 %470
        %v472 = vmax.f32 %v446, %v447
        %473 = vmax.xlane.f32.xlu0 %v472
        %v474 = vpop.xlane.xlu0 %473
        %v475 = vmax.f32 %v448, %v449
        %476 = vmax.xlane.f32.xlu0 %v475
        %v477 = vpop.xlane.xlu0 %476
        %v478 = vmax.f32 %v450, %v451
        %479 = vmax.xlane.f32.xlu0 %v478
        %v480 = vpop.xlane.xlu0 %479
        %v481 = vld [vmem:[%s2] sm:$0xff]
        %v482 = vld [vmem:[%s2 + $0x8] sm:$0xff]
        %v483 = vld [vmem:[%s2 + $0x10] sm:$0xff]
        %v484 = vld [vmem:[%s2 + $0x18] sm:$0xff]
        %v485 = vld [vmem:[%s3] sm:$0x1]
        %v486 = vmul.f32 %v465, %v481
        %v487 = vmul.f32 %v466, %v482
        %v488 = vmul.f32 %v467, %v483
        %v489 = vmul.f32 %v468, %v484
        %vm490 = vcmask 15360
        %v491 = vsel %vm490, %v486, 0.0
        %v492 = vsel %vm490, %v487, 0.0
        %v493 = vadd.f32 %v491, %v492
        %v494 = vsel %vm490, %v488, 0.0
        %v495 = vadd.f32 %v493, %v494
        %v496 = vsel %vm490, %v489, 0.0
        %v497 = vadd.f32 %v495, %v496
        %v498 = vrot.slane %v497, 4
        %v499 = vadd.f32 %v497, %v498
        %v500 = vrot.slane %v499, 2
        %v501 = vadd.f32 %v499, %v500
        %v502 = vrot.slane %v501, 1
        %v503 = vadd.f32 %v501, %v502
        %v504 = vadd.f32 %v503, %v485
        %v505 = vmax.f32 %v504, 0.0
        %v506 = vld [vmem:[%s4] sm:$0xff]
        %v507 = vld [vmem:[%s4 + $0x8] sm:$0xff]
        %v508 = vld [vmem:[%s4 + $0x10] sm:$0xff]
        %v509 = vld [vmem:[%s4 + $0x18] sm:$0xff]
        %v510 = vld [vmem:[%s5] sm:$0xff]
        %v511 = vld [vmem:[%s5 + $0x8] sm:$0xff]
        %v512 = vld [vmem:[%s5 + $0x10] sm:$0xff]
        %v513 = vld [vmem:[%s5 + $0x18] sm:$0xff]
        %v514 = vlaneseq
        %v515 = vshrl.u32 %v514, 7
        %v516 = vsub.s32 0, %v515
        %v517 = vrot.slane %v505, %v516
        %v518 = vmul.f32 %v517, %v506
        %v519 = vmul.f32 %v517, %v507
        %v520 = vmul.f32 %v517, %v508
        %v521 = vmul.f32 %v517, %v509
        %v522 = vsel %vm490, %v518, 0.0
        %523 = vadd.xlane.f32.xlu0 %v522
        %v524 = vpop.xlane.xlu0 %523
        %v525 = vsel %vm490, %v519, 0.0
        %526 = vadd.xlane.f32.xlu0 %v525
        %v527 = vpop.xlane.xlu0 %526
        %v528 = vsel %vm490, %v520, 0.0
        %529 = vadd.xlane.f32.xlu0 %v528
        %v530 = vpop.xlane.xlu0 %529
        %v531 = vsel %vm490, %v521, 0.0
        %532 = vadd.xlane.f32.xlu0 %v531
        %v533 = vpop.xlane.xlu0 %532
        %v534 = vadd.f32 %v524, %v510
        %v535 = vadd.f32 %v527, %v511
        %v536 = vadd.f32 %v530, %v512
        %v537 = vadd.f32 %v533, %v513
        %v538 = vxor.u32 %v534, 2147483648
        %v539 = vxor.u32 %v535, 2147483648
        %v540 = vxor.u32 %v536, 2147483648
        %v541 = vxor.u32 %v537, 2147483648
        %v542 = vmul.f32 %v538, 1.442695
        %v543 = vpow.pop %v542
        %v544 = vmul.f32 %v539, 1.442695
        %v545 = vpow.pop %v544
        %v546 = vmul.f32 %v540, 1.442695
        %v547 = vpow.pop %v546
        %v548 = vmul.f32 %v541, 1.442695
        %v549 = vpow.pop %v548
        %v550 = vadd.f32 %v543, 1.0
        %v551 = vadd.f32 %v545, 1.0
        %v552 = vadd.f32 %v547, 1.0
        %v553 = vadd.f32 %v549, 1.0
        %v554 = vrcp.pop %v550
        %v555 = vmul.f32 1.0, %v554
        %v556 = vrcp.pop %v551
        %v557 = vmul.f32 1.0, %v556
        %v558 = vrcp.pop %v552
        %v559 = vmul.f32 1.0, %v558
        %v560 = vrcp.pop %v553
        %v561 = vmul.f32 1.0, %v560
        %v562 = vld [vmem:[%s6] sm:$0xff]
        %v563 = vld [vmem:[%s6 + $0x8] sm:$0xff]
        %v564 = vld [vmem:[%s6 + $0x10] sm:$0xff]
        %v565 = vld [vmem:[%s6 + $0x18] sm:$0xff]
        %v566 = vmul.f32 %v471, %v562
        %v567 = vmul.f32 %v474, %v563
        %v568 = vmul.f32 %v477, %v564
        %v569 = vmul.f32 %v480, %v565
        %v570 = vsel %vm490, %v566, 0.0
        %v571 = vsel %vm490, %v567, 0.0
        %v572 = vadd.f32 %v570, %v571
        %v573 = vsel %vm490, %v568, 0.0
        %v574 = vadd.f32 %v572, %v573
        %v575 = vsel %vm490, %v569, 0.0
        %v576 = vadd.f32 %v574, %v575
        %v577 = vrot.slane %v576, 4
        %v578 = vadd.f32 %v576, %v577
        %v579 = vrot.slane %v578, 2
        %v580 = vadd.f32 %v578, %v579
        %v581 = vrot.slane %v580, 1
        %v582 = vadd.f32 %v580, %v581
        %v583 = vmax.f32 %v582, 0.0
        %v584 = vld [vmem:[%s7] sm:$0xff]
        %v585 = vld [vmem:[%s7 + $0x8] sm:$0xff]
        %v586 = vld [vmem:[%s7 + $0x10] sm:$0xff]
        %v587 = vld [vmem:[%s7 + $0x18] sm:$0xff]
        %v588 = vmul.f32 %v583, %v584
        %v589 = vmul.f32 %v583, %v585
        %v590 = vmul.f32 %v583, %v586
        %v591 = vmul.f32 %v583, %v587
        %v592 = vsel %vm490, %v588, 0.0
        %593 = vadd.xlane.f32.xlu0 %v592
        %v594 = vpop.xlane.xlu0 %593
        %v595 = vsel %vm490, %v589, 0.0
        %596 = vadd.xlane.f32.xlu0 %v595
        %v597 = vpop.xlane.xlu0 %596
        %v598 = vsel %vm490, %v590, 0.0
        %599 = vadd.xlane.f32.xlu0 %v598
        %v600 = vpop.xlane.xlu0 %599
        %v601 = vsel %vm490, %v591, 0.0
        %602 = vadd.xlane.f32.xlu0 %v601
        %v603 = vpop.xlane.xlu0 %602
        %v604 = vxor.u32 %v594, 2147483648
        %v605 = vxor.u32 %v597, 2147483648
        %v606 = vxor.u32 %v600, 2147483648
        %v607 = vxor.u32 %v603, 2147483648
        %v608 = vmul.f32 %v604, 1.442695
        %v609 = vpow.pop %v608
        %v610 = vmul.f32 %v605, 1.442695
        %v611 = vpow.pop %v610
        %v612 = vmul.f32 %v606, 1.442695
        %v613 = vpow.pop %v612
        %v614 = vmul.f32 %v607, 1.442695
        %v615 = vpow.pop %v614
        %v616 = vadd.f32 %v609, 1.0
        %v617 = vadd.f32 %v611, 1.0
        %v618 = vadd.f32 %v613, 1.0
        %v619 = vadd.f32 %v615, 1.0
        %v620 = vrcp.pop %v616
        %v621 = vmul.f32 1.0, %v620
        %v622 = vrcp.pop %v617
        %v623 = vmul.f32 1.0, %v622
        %v624 = vrcp.pop %v618
        %v625 = vmul.f32 1.0, %v624
        %v626 = vrcp.pop %v619
        %v627 = vmul.f32 1.0, %v626
        %v628 = vadd.f32 %v555, %v621
        %v629 = vadd.f32 %v557, %v623
        %v630 = vadd.f32 %v559, %v625
        %v631 = vadd.f32 %v561, %v627
        %v632 = vld [vmem:[%s8] sm:$0xff]
        %v633 = vld [vmem:[%s8 + $0x8] sm:$0xff]
        %v634 = vld [vmem:[%s8 + $0x10] sm:$0xff]
        %v635 = vld [vmem:[%s8 + $0x18] sm:$0xff]
        %637 = vset.pattern.permute.xlu0 0
        %638 = vperm.xlu0 %637, %v628
        %v639 = vpop.permute.xlu0 %638
        %642 = vset.pattern.permute.xlu0 0
        %643 = vperm.xlu0 %642, %v629
        %v644 = vpop.permute.xlu0 %643
        %647 = vset.pattern.permute.xlu0 0
        %648 = vperm.xlu0 %647, %v630
        %v649 = vpop.permute.xlu0 %648
        %652 = vset.pattern.permute.xlu0 0
        %653 = vperm.xlu0 %652, %v631
        %v654 = vpop.permute.xlu0 %653
        %v656 = vmul.f32 %v639, %v632
        %v657 = vmul.f32 %v644, %v633
        %v658 = vmul.f32 %v649, %v634
        %v659 = vmul.f32 %v654, %v635
        %v660 = vsel %vm490, %v656, 0.0
        %v661 = vsel %vm490, %v657, 0.0
        %v662 = vadd.f32 %v660, %v661
        %v663 = vsel %vm490, %v658, 0.0
        %v664 = vadd.f32 %v662, %v663
        %v665 = vsel %vm490, %v659, 0.0
        %v666 = vadd.f32 %v664, %v665
        %v667 = vrot.slane %v666, 4
        %v668 = vadd.f32 %v666, %v667
        %v669 = vrot.slane %v668, 2
        %v670 = vadd.f32 %v668, %v669
        %v671 = vrot.slane %v670, 1
        %v672 = vadd.f32 %v670, %v671
        %v673 = vmax.f32 %v672, 0.0
        %v674 = vld [vmem:[%s9] sm:$0xff]
        %v675 = vld [vmem:[%s9 + $0x8] sm:$0xff]
        %v676 = vld [vmem:[%s9 + $0x10] sm:$0xff]
        %v677 = vld [vmem:[%s9 + $0x18] sm:$0xff]
        %v678 = vmul.f32 %v673, %v674
        %v679 = vmul.f32 %v673, %v675
        %v680 = vmul.f32 %v673, %v676
        %v681 = vmul.f32 %v673, %v677
        %v682 = vsel %vm490, %v678, 0.0
        %683 = vadd.xlane.f32.xlu0 %v682
        %v684 = vpop.xlane.xlu0 %683
        %v685 = vsel %vm490, %v679, 0.0
        %686 = vadd.xlane.f32.xlu0 %v685
        %v687 = vpop.xlane.xlu0 %686
        %v688 = vsel %vm490, %v680, 0.0
        %689 = vadd.xlane.f32.xlu0 %v688
        %v690 = vpop.xlane.xlu0 %689
        %v691 = vsel %vm490, %v681, 0.0
        %692 = vadd.xlane.f32.xlu0 %v691
        %v693 = vpop.xlane.xlu0 %692
        %v694 = vxor.u32 %v684, 2147483648
        %v695 = vxor.u32 %v687, 2147483648
        %v696 = vxor.u32 %v690, 2147483648
        %v697 = vxor.u32 %v693, 2147483648
        %v698 = vmul.f32 %v694, 1.442695
        %v699 = vpow.pop %v698
        %v700 = vmul.f32 %v695, 1.442695
        %v701 = vpow.pop %v700
        %v702 = vmul.f32 %v696, 1.442695
        %v703 = vpow.pop %v702
        %v704 = vmul.f32 %v697, 1.442695
        %v705 = vpow.pop %v704
        %v706 = vadd.f32 %v699, 1.0
        %v707 = vadd.f32 %v701, 1.0
        %v708 = vadd.f32 %v703, 1.0
        %v709 = vadd.f32 %v705, 1.0
        %v710 = vrcp.pop %v706
        %v711 = vmul.f32 1.0, %v710
        %v712 = vrcp.pop %v707
        %v713 = vmul.f32 1.0, %v712
        %v714 = vrcp.pop %v708
        %v715 = vmul.f32 1.0, %v714
        %v716 = vrcp.pop %v709
        %v717 = vmul.f32 1.0, %v716
        %v718 = vadd.f32 %v711, 1.0
        %v719 = vadd.f32 %v713, 1.0
        %v720 = vadd.f32 %v715, 1.0
        %v721 = vadd.f32 %v717, 1.0
        %v722 = vmul.f32 %v436, %v718
        %v723 = vmul.f32 %v437, %v718
        %v724 = vmul.f32 %v438, %v719
        %v725 = vmul.f32 %v439, %v719
        %v726 = vmul.f32 %v440, %v720
        %v727 = vmul.f32 %v441, %v720
        %v728 = vmul.f32 %v442, %v721
        %v729 = vmul.f32 %v443, %v721
        %730 = vst [vmem:[%s423] sm:$0xff] %v722
        %731 = vst [vmem:[%s423 + $0x8] sm:$0xff] %v723
        %732 = vst [vmem:[%s423 + $0x10] sm:$0xff] %v724
        %733 = vst [vmem:[%s423 + $0x18] sm:$0xff] %v725
        %734 = vst [vmem:[%s423 + $0x20] sm:$0xff] %v726
        %735 = vst [vmem:[%s423 + $0x28] sm:$0xff] %v727
        %736 = vst [vmem:[%s423 + $0x30] sm:$0xff] %v728
        %737 = vst [vmem:[%s423 + $0x38] sm:$0xff] %v729
        %v738 = vmul.f32 %v444, %v718
        %v739 = vmul.f32 %v445, %v718
        %v740 = vmul.f32 %v446, %v719
        %v741 = vmul.f32 %v447, %v719
        %v742 = vmul.f32 %v448, %v720
        %v743 = vmul.f32 %v449, %v720
        %v744 = vmul.f32 %v450, %v721
        %v745 = vmul.f32 %v451, %v721
        %746 = vst [vmem:[%s430] sm:$0xff] %v738
        %747 = vst [vmem:[%s430 + $0x8] sm:$0xff] %v739
        %748 = vst [vmem:[%s430 + $0x10] sm:$0xff] %v740
        %749 = vst [vmem:[%s430 + $0x18] sm:$0xff] %v741
        %750 = vst [vmem:[%s430 + $0x20] sm:$0xff] %v742
        %751 = vst [vmem:[%s430 + $0x28] sm:$0xff] %v743
        %752 = vst [vmem:[%s430 + $0x30] sm:$0xff] %v744
        %753 = vst [vmem:[%s430 + $0x38] sm:$0xff] %v745
        %s754 = sand.u32 %s260, 1
        %s755 = scalar_lea.sflag [#allocation4], %s754
        %s756 = sand.u32 %s260, 1
        %s757 = smul.addr %s756, 64
        %s758 = scalar_lea.vmem [#allocation5], %s757
        %s759 = sand.u32 %s286, 1
        %s760 = scalar_lea.sflag [#allocation7], %s759
        %s761 = sand.u32 %s286, 1
        %s762 = smul.addr %s761, 64
        %s763 = scalar_lea.vmem [#allocation6], %s762
        // Predicated region
        $region65: #{tpu_custom_call.1} parent=59 // pred_check
          %p764 = pneg %p270
        $region66: #{tpu_custom_call.1} parent=59 // pred_check_branch
          %766 = sbr.rel (%p764) target = $region68
        $region67: #{tpu_custom_call.1} parent=59 // pred_region
          %s768 = ssub.s32 1024, 1024
          %769 = vsyncadd %s755, %s768
          %s770 = smul.addr %s32, 8
          %s771 = smul.addr %s770, 128
          %s772 = scalar_lea.hbm %s10, %s771
          %s773 = sshll.u32 %s758, 4
          %s774 = int_to_ptr.vmem [resolvable:$true] %s773
          %779 = dma.vmem_to_hbm [thread:$0]  %s774, 1024, %s772, %s755, 256, 256, 16
        $region68: #{tpu_custom_call.1} parent=59 // pred_fallthru
          _
        // Predicated region
        $region69: #{tpu_custom_call.1} parent=59 // pred_check
          %p780 = pneg %p296
        $region70: #{tpu_custom_call.1} parent=59 // pred_check_branch
          %782 = sbr.rel (%p780) target = $region72
        $region71: #{tpu_custom_call.1} parent=59 // pred_region
          %s784 = ssub.s32 1024, 1024
          %785 = vsyncadd %s760, %s784
          %s786 = smul.addr %s32, 8
          %s787 = smul.addr %s786, 128
          %s788 = scalar_lea.hbm %s11, %s787
          %s789 = sshll.u32 %s763, 4
          %s790 = int_to_ptr.vmem [resolvable:$true] %s789
          %795 = dma.vmem_to_hbm [thread:$0]  %s790, 1024, %s788, %s760, 256, 256, 16
        $region72: #{tpu_custom_call.1} parent=59 // pred_fallthru
          _
      $region60: #{tpu_custom_call.1} parent=5 // pred_fallthru
        _
      %p796 = scmp.le.s32.totalorder 2, %s27
      // Predicated region
      $region73: #{tpu_custom_call.1} parent=5 // pred_check
        %p797 = pneg %p796
      $region74: #{tpu_custom_call.1} parent=5 // pred_check_branch
        %799 = sbr.rel (%p797) target = $region76
      $region75: #{tpu_custom_call.1} parent=5 // pred_region
        %s800 = ssub.s32 %s27, 2
        // Predicated region
        $region77: #{tpu_custom_call.1} parent=75 // pred_check
          %p801 = pneg %p276
        $region78: #{tpu_custom_call.1} parent=75 // pred_check_branch
          %803 = sbr.rel (%p801) target = $region80
        $region79: #{tpu_custom_call.1} parent=75 // pred_region
          %s804 = sand.u32 %s261, 1
          %s805 = scalar_lea.sflag [#allocation4], %s804
          %s806 = sand.u32 %s261, 1
          %s807 = smul.addr %s806, 64
          %s808 = scalar_lea.vmem [#allocation5], %s807
          %809 = dma.done %s805, 1024
        $region80: #{tpu_custom_call.1} parent=75 // pred_fallthru
          _
        // Predicated region
        $region81: #{tpu_custom_call.1} parent=75 // pred_check
          %p810 = pneg %p302
        $region82: #{tpu_custom_call.1} parent=75 // pred_check_branch
          %812 = sbr.rel (%p810) target = $region84
        $region83: #{tpu_custom_call.1} parent=75 // pred_region
          %s813 = sand.u32 %s287, 1
          %s814 = scalar_lea.sflag [#allocation7], %s813
          %s815 = sand.u32 %s287, 1
          %s816 = smul.addr %s815, 64
          %s817 = scalar_lea.vmem [#allocation6], %s816
          %818 = dma.done %s814, 1024
        $region84: #{tpu_custom_call.1} parent=75 // pred_fallthru
          _
      $region76: #{tpu_custom_call.1} parent=5 // pred_fallthru
        _
    $region6: #{tpu_custom_call.1} parent=1 // loop_footer
      %s31 = sadd.s32 1, %s27
    $region7: #{tpu_custom_call.1} parent=1 // loop_footer_branch
      %26 = sbr.rel target = $region3
    $region8: #{tpu_custom_call.1} parent=1 // loop_exit
      _
    %819 = vsyncpa [#allocation3], 1
    %s820 = scalar_lea.sflag [#allocation3], 1
    %821 = vsyncpa %s820, 1
    %822 = vsyncpa [#allocation4], 1
    %s823 = scalar_lea.sflag [#allocation4], 1
    %824 = vsyncpa %s823, 1
    %825 = vsyncpa [#allocation7], 1
    %s826 = scalar_lea.sflag [#allocation7], 1
    %827 = vsyncpa %s826, 1

</llo_original>
